<compile_context>
chip_gen: v7x
topology: tpu7x:2x2x1
jax: 0.10.0
libtpu: 0.0.40
codegen_flags: <defaults>
</compile_context>

<pallas_src>
import functools

import jax
import jax.numpy as jnp
import numpy as np
from jax.experimental import pallas as pl
from jax.experimental.pallas import tpu as pltpu


def _embed_gather_kernel(rows_per_step, ids_ref, emb_hbm, out_ref, sem):
    """Gather `rows_per_step` embedding rows with concurrent manual DMAs.

    ids_ref  : SMEM (B,) int32 token ids (scalar prefetch)
    emb_hbm  : raw HBM ref to the (V, E) embedding table (memory_space=pl.ANY)
    out_ref  : (rows_per_step, E) VMEM output block for this grid step
    sem      : (rows_per_step,) DMA semaphores
    """
    base = pl.program_id(0) * rows_per_step

    # Build one DMA descriptor per row: HBM row ids[base+b] -> VMEM out row b.
    copies = []
    for b in range(rows_per_step):  # static unroll; rows_per_step is small
        row = ids_ref[base + b]
        copies.append(
            pltpu.make_async_copy(
                emb_hbm.at[pl.ds(row, 1), :],
                out_ref.at[pl.ds(b, 1), :],
                sem.at[b],
            )
        )
    # Fan-out: start every gather before waiting on any, so all row fetches
    # are in flight concurrently (HBM-latency hiding).
    for cp in copies:
        cp.start()
    for cp in copies:
        cp.wait()


def decoder_rnn_preprocess(predict, embed_table):
    """Embedding lookup: predict (B,) int -> (B, E) rows of embed_table (V, E)."""
    B = predict.shape[0]
    V, E = embed_table.shape

    # Clamp ids so a rogue token id can never drive an OOB HBM DMA.
    ids = jnp.clip(predict.astype(jnp.int32), 0, V - 1)

    # Chunk the batch: one grid step handles `rows_per_step` concurrent DMAs.
    # For small B this is a single step; for large B the chunks form a
    # "parallel" grid axis (v7x megacore can split them across TensorCores).
    rows_per_step = B
    for cand in (256, 128, 64):
        if B > cand and B % cand == 0:
            rows_per_step = cand
            break
    grid = (B // rows_per_step,)

    dtype_bytes = jnp.dtype(embed_table.dtype).itemsize
    kernel = functools.partial(_embed_gather_kernel, rows_per_step)

    out = pl.pallas_call(
        kernel,
        out_shape=jax.ShapeDtypeStruct((B, E), embed_table.dtype),
        grid_spec=pltpu.PrefetchScalarGridSpec(
            num_scalar_prefetch=1,          # token ids -> SMEM
            grid=grid,
            in_specs=[
                # Table stays in HBM; rows are gathered manually in the body.
                pl.BlockSpec(memory_space=pl.ANY),
            ],
            # Dense (rows_per_step, E) output block per step -> single
            # unmasked, lane/sublane-dense writeback.
            out_specs=pl.BlockSpec((rows_per_step, E), lambda i, ids_ref: (i, 0)),
            scratch_shapes=[pltpu.SemaphoreType.DMA((rows_per_step,))],
        ),
        compiler_params=pltpu.CompilerParams(
            dimension_semantics=("parallel",),
        ),
        cost_estimate=pl.CostEstimate(
            flops=0,
            transcendentals=0,
            bytes_accessed=2 * B * E * dtype_bytes,  # read B rows + write B rows
        ),
    )(ids, embed_table)
    return out


def _reference(predict, embed_table):
    return jnp.take(embed_table, predict.astype(jnp.int32), axis=0)


if __name__ == "__main__":
    # Small shapes consistent with the module: embed_size=256 (module default),
    # modest vocab, batch of 8 token ids (one greedy-decode step's "predict").
    B, VOCAB, EMBED = 8, 512, 256

    key = jax.random.PRNGKey(0)
    k_tbl, k_ids = jax.random.split(key, 2)

    embed_table = 0.05 * jax.random.normal(k_tbl, (VOCAB, EMBED), jnp.float32)
    predict = jax.random.randint(k_ids, (B,), 0, VOCAB, jnp.int32)

    out = decoder_rnn_preprocess(predict, embed_table)
    out = jax.block_until_ready(out)

    ref = _reference(predict, embed_table)
    np.testing.assert_allclose(np.asarray(out), np.asarray(ref), rtol=0.0, atol=0.0)

    print("KERNEL_OK")
</pallas_src>

<mosaic_0001>
module attributes {stable_mosaic.version = 11 : i64} {
  func.func @_embed_gather_kernel(%arg0: i32, %arg1: memref<8xi32, #tpu.memory_space<smem>>, %arg2: memref<512x256xf32, #tpu.memory_space<any>>, %arg3: memref<8x256xf32, #tpu.memory_space<vmem>>, %arg4: memref<8x!tpu.dma_semaphore, #tpu.memory_space<semaphore_mem>>) attributes {dimension_semantics = [#tpu.dimension_semantics<parallel>], iteration_bounds = array<i64: 1>, scalar_prefetch = 1 : i64, scratch_operands = 1 : i64, tpu.core_type = #tpu.core_type<tc>, window_params = [{}, {transform_indices = @transform_1, window_bounds = array<i64: 8, 256>}]} {
    %c8_i32 = arith.constant 8 : i32
    %0 = arith.muli %arg0, %c8_i32 : i32
    %c0_i32 = arith.constant 0 : i32
    %1 = arith.addi %0, %c0_i32 : i32
    %2 = arith.index_cast %1 : i32 to index
    %3 = memref.load %arg1[%2] : memref<8xi32, #tpu.memory_space<smem>>
    %c1_i32 = arith.constant 1 : i32
    %4 = arith.addi %0, %c1_i32 : i32
    %5 = arith.index_cast %4 : i32 to index
    %6 = memref.load %arg1[%5] : memref<8xi32, #tpu.memory_space<smem>>
    %c2_i32 = arith.constant 2 : i32
    %7 = arith.addi %0, %c2_i32 : i32
    %8 = arith.index_cast %7 : i32 to index
    %9 = memref.load %arg1[%8] : memref<8xi32, #tpu.memory_space<smem>>
    %c3_i32 = arith.constant 3 : i32
    %10 = arith.addi %0, %c3_i32 : i32
    %11 = arith.index_cast %10 : i32 to index
    %12 = memref.load %arg1[%11] : memref<8xi32, #tpu.memory_space<smem>>
    %c4_i32 = arith.constant 4 : i32
    %13 = arith.addi %0, %c4_i32 : i32
    %14 = arith.index_cast %13 : i32 to index
    %15 = memref.load %arg1[%14] : memref<8xi32, #tpu.memory_space<smem>>
    %c5_i32 = arith.constant 5 : i32
    %16 = arith.addi %0, %c5_i32 : i32
    %17 = arith.index_cast %16 : i32 to index
    %18 = memref.load %arg1[%17] : memref<8xi32, #tpu.memory_space<smem>>
    %c6_i32 = arith.constant 6 : i32
    %19 = arith.addi %0, %c6_i32 : i32
    %20 = arith.index_cast %19 : i32 to index
    %21 = memref.load %arg1[%20] : memref<8xi32, #tpu.memory_space<smem>>
    %c7_i32 = arith.constant 7 : i32
    %22 = arith.addi %0, %c7_i32 : i32
    %23 = arith.index_cast %22 : i32 to index
    %24 = memref.load %arg1[%23] : memref<8xi32, #tpu.memory_space<smem>>
    %c0_i32_0 = arith.constant 0 : i32
    %c0_i32_1 = arith.constant 0 : i32
    %25 = tpu.memref_slice %arg2[%3, %c0_i32_1] : memref<512x256xf32, #tpu.memory_space<any>> -> memref<1x256xf32, #tpu.memory_space<any>>
    %c0_i32_2 = arith.constant 0 : i32
    %c0_i32_3 = arith.constant 0 : i32
    %26 = tpu.memref_slice %arg3[%c0_i32_2, %c0_i32_3] : memref<8x256xf32, #tpu.memory_space<vmem>> -> memref<1x256xf32, #tpu.memory_space<vmem>>
    %27 = tpu.memref_slice %arg4[%c0_i32_0] : memref<8x!tpu.dma_semaphore, #tpu.memory_space<semaphore_mem>> -> memref<1x!tpu.dma_semaphore, #tpu.memory_space<semaphore_mem>>
    %28 = tpu.memref_squeeze %27 : memref<1x!tpu.dma_semaphore, #tpu.memory_space<semaphore_mem>> -> memref<!tpu.dma_semaphore, #tpu.memory_space<semaphore_mem>>
    tpu.enqueue_dma source(%25 : memref<1x256xf32, #tpu.memory_space<any>>) target(%26 : memref<1x256xf32, #tpu.memory_space<vmem>>) target_semaphore(%28 : memref<!tpu.dma_semaphore, #tpu.memory_space<semaphore_mem>>)
    %c1_i32_4 = arith.constant 1 : i32
    %c0_i32_5 = arith.constant 0 : i32
    %29 = tpu.memref_slice %arg2[%6, %c0_i32_5] : memref<512x256xf32, #tpu.memory_space<any>> -> memref<1x256xf32, #tpu.memory_space<any>>
    %c1_i32_6 = arith.constant 1 : i32
    %c0_i32_7 = arith.constant 0 : i32
    %30 = tpu.memref_slice %arg3[%c1_i32_6, %c0_i32_7] : memref<8x256xf32, #tpu.memory_space<vmem>> -> memref<1x256xf32, #tpu.memory_space<vmem>>
    %31 = tpu.memref_slice %arg4[%c1_i32_4] : memref<8x!tpu.dma_semaphore, #tpu.memory_space<semaphore_mem>> -> memref<1x!tpu.dma_semaphore, #tpu.memory_space<semaphore_mem>>
    %32 = tpu.memref_squeeze %31 : memref<1x!tpu.dma_semaphore, #tpu.memory_space<semaphore_mem>> -> memref<!tpu.dma_semaphore, #tpu.memory_space<semaphore_mem>>
    tpu.enqueue_dma source(%29 : memref<1x256xf32, #tpu.memory_space<any>>) target(%30 : memref<1x256xf32, #tpu.memory_space<vmem>>) target_semaphore(%32 : memref<!tpu.dma_semaphore, #tpu.memory_space<semaphore_mem>>)
    %c2_i32_8 = arith.constant 2 : i32
    %c0_i32_9 = arith.constant 0 : i32
    %33 = tpu.memref_slice %arg2[%9, %c0_i32_9] : memref<512x256xf32, #tpu.memory_space<any>> -> memref<1x256xf32, #tpu.memory_space<any>>
    %c2_i32_10 = arith.constant 2 : i32
    %c0_i32_11 = arith.constant 0 : i32
    %34 = tpu.memref_slice %arg3[%c2_i32_10, %c0_i32_11] : memref<8x256xf32, #tpu.memory_space<vmem>> -> memref<1x256xf32, #tpu.memory_space<vmem>>
    %35 = tpu.memref_slice %arg4[%c2_i32_8] : memref<8x!tpu.dma_semaphore, #tpu.memory_space<semaphore_mem>> -> memref<1x!tpu.dma_semaphore, #tpu.memory_space<semaphore_mem>>
    %36 = tpu.memref_squeeze %35 : memref<1x!tpu.dma_semaphore, #tpu.memory_space<semaphore_mem>> -> memref<!tpu.dma_semaphore, #tpu.memory_space<semaphore_mem>>
    tpu.enqueue_dma source(%33 : memref<1x256xf32, #tpu.memory_space<any>>) target(%34 : memref<1x256xf32, #tpu.memory_space<vmem>>) target_semaphore(%36 : memref<!tpu.dma_semaphore, #tpu.memory_space<semaphore_mem>>)
    %c3_i32_12 = arith.constant 3 : i32
    %c0_i32_13 = arith.constant 0 : i32
    %37 = tpu.memref_slice %arg2[%12, %c0_i32_13] : memref<512x256xf32, #tpu.memory_space<any>> -> memref<1x256xf32, #tpu.memory_space<any>>
    %c3_i32_14 = arith.constant 3 : i32
    %c0_i32_15 = arith.constant 0 : i32
    %38 = tpu.memref_slice %arg3[%c3_i32_14, %c0_i32_15] : memref<8x256xf32, #tpu.memory_space<vmem>> -> memref<1x256xf32, #tpu.memory_space<vmem>>
    %39 = tpu.memref_slice %arg4[%c3_i32_12] : memref<8x!tpu.dma_semaphore, #tpu.memory_space<semaphore_mem>> -> memref<1x!tpu.dma_semaphore, #tpu.memory_space<semaphore_mem>>
    %40 = tpu.memref_squeeze %39 : memref<1x!tpu.dma_semaphore, #tpu.memory_space<semaphore_mem>> -> memref<!tpu.dma_semaphore, #tpu.memory_space<semaphore_mem>>
    tpu.enqueue_dma source(%37 : memref<1x256xf32, #tpu.memory_space<any>>) target(%38 : memref<1x256xf32, #tpu.memory_space<vmem>>) target_semaphore(%40 : memref<!tpu.dma_semaphore, #tpu.memory_space<semaphore_mem>>)
    %c4_i32_16 = arith.constant 4 : i32
    %c0_i32_17 = arith.constant 0 : i32
    %41 = tpu.memref_slice %arg2[%15, %c0_i32_17] : memref<512x256xf32, #tpu.memory_space<any>> -> memref<1x256xf32, #tpu.memory_space<any>>
    %c4_i32_18 = arith.constant 4 : i32
    %c0_i32_19 = arith.constant 0 : i32
    %42 = tpu.memref_slice %arg3[%c4_i32_18, %c0_i32_19] : memref<8x256xf32, #tpu.memory_space<vmem>> -> memref<1x256xf32, #tpu.memory_space<vmem>>
    %43 = tpu.memref_slice %arg4[%c4_i32_16] : memref<8x!tpu.dma_semaphore, #tpu.memory_space<semaphore_mem>> -> memref<1x!tpu.dma_semaphore, #tpu.memory_space<semaphore_mem>>
    %44 = tpu.memref_squeeze %43 : memref<1x!tpu.dma_semaphore, #tpu.memory_space<semaphore_mem>> -> memref<!tpu.dma_semaphore, #tpu.memory_space<semaphore_mem>>
    tpu.enqueue_dma source(%41 : memref<1x256xf32, #tpu.memory_space<any>>) target(%42 : memref<1x256xf32, #tpu.memory_space<vmem>>) target_semaphore(%44 : memref<!tpu.dma_semaphore, #tpu.memory_space<semaphore_mem>>)
    %c5_i32_20 = arith.constant 5 : i32
    %c0_i32_21 = arith.constant 0 : i32
    %45 = tpu.memref_slice %arg2[%18, %c0_i32_21] : memref<512x256xf32, #tpu.memory_space<any>> -> memref<1x256xf32, #tpu.memory_space<any>>
    %c5_i32_22 = arith.constant 5 : i32
    %c0_i32_23 = arith.constant 0 : i32
    %46 = tpu.memref_slice %arg3[%c5_i32_22, %c0_i32_23] : memref<8x256xf32, #tpu.memory_space<vmem>> -> memref<1x256xf32, #tpu.memory_space<vmem>>
    %47 = tpu.memref_slice %arg4[%c5_i32_20] : memref<8x!tpu.dma_semaphore, #tpu.memory_space<semaphore_mem>> -> memref<1x!tpu.dma_semaphore, #tpu.memory_space<semaphore_mem>>
    %48 = tpu.memref_squeeze %47 : memref<1x!tpu.dma_semaphore, #tpu.memory_space<semaphore_mem>> -> memref<!tpu.dma_semaphore, #tpu.memory_space<semaphore_mem>>
    tpu.enqueue_dma source(%45 : memref<1x256xf32, #tpu.memory_space<any>>) target(%46 : memref<1x256xf32, #tpu.memory_space<vmem>>) target_semaphore(%48 : memref<!tpu.dma_semaphore, #tpu.memory_space<semaphore_mem>>)
    %c6_i32_24 = arith.constant 6 : i32
    %c0_i32_25 = arith.constant 0 : i32
    %49 = tpu.memref_slice %arg2[%21, %c0_i32_25] : memref<512x256xf32, #tpu.memory_space<any>> -> memref<1x256xf32, #tpu.memory_space<any>>
    %c6_i32_26 = arith.constant 6 : i32
    %c0_i32_27 = arith.constant 0 : i32
    %50 = tpu.memref_slice %arg3[%c6_i32_26, %c0_i32_27] : memref<8x256xf32, #tpu.memory_space<vmem>> -> memref<1x256xf32, #tpu.memory_space<vmem>>
    %51 = tpu.memref_slice %arg4[%c6_i32_24] : memref<8x!tpu.dma_semaphore, #tpu.memory_space<semaphore_mem>> -> memref<1x!tpu.dma_semaphore, #tpu.memory_space<semaphore_mem>>
    %52 = tpu.memref_squeeze %51 : memref<1x!tpu.dma_semaphore, #tpu.memory_space<semaphore_mem>> -> memref<!tpu.dma_semaphore, #tpu.memory_space<semaphore_mem>>
    tpu.enqueue_dma source(%49 : memref<1x256xf32, #tpu.memory_space<any>>) target(%50 : memref<1x256xf32, #tpu.memory_space<vmem>>) target_semaphore(%52 : memref<!tpu.dma_semaphore, #tpu.memory_space<semaphore_mem>>)
    %c7_i32_28 = arith.constant 7 : i32
    %c0_i32_29 = arith.constant 0 : i32
    %53 = tpu.memref_slice %arg2[%24, %c0_i32_29] : memref<512x256xf32, #tpu.memory_space<any>> -> memref<1x256xf32, #tpu.memory_space<any>>
    %c7_i32_30 = arith.constant 7 : i32
    %c0_i32_31 = arith.constant 0 : i32
    %54 = tpu.memref_slice %arg3[%c7_i32_30, %c0_i32_31] : memref<8x256xf32, #tpu.memory_space<vmem>> -> memref<1x256xf32, #tpu.memory_space<vmem>>
    %55 = tpu.memref_slice %arg4[%c7_i32_28] : memref<8x!tpu.dma_semaphore, #tpu.memory_space<semaphore_mem>> -> memref<1x!tpu.dma_semaphore, #tpu.memory_space<semaphore_mem>>
    %56 = tpu.memref_squeeze %55 : memref<1x!tpu.dma_semaphore, #tpu.memory_space<semaphore_mem>> -> memref<!tpu.dma_semaphore, #tpu.memory_space<semaphore_mem>>
    tpu.enqueue_dma source(%53 : memref<1x256xf32, #tpu.memory_space<any>>) target(%54 : memref<1x256xf32, #tpu.memory_space<vmem>>) target_semaphore(%56 : memref<!tpu.dma_semaphore, #tpu.memory_space<semaphore_mem>>)
    %c0_i32_32 = arith.constant 0 : i32
    %c0_i32_33 = arith.constant 0 : i32
    %57 = tpu.memref_slice %arg2[%3, %c0_i32_33] : memref<512x256xf32, #tpu.memory_space<any>> -> memref<1x256xf32, #tpu.memory_space<any>>
    %c0_i32_34 = arith.constant 0 : i32
    %c0_i32_35 = arith.constant 0 : i32
    %58 = tpu.memref_slice %arg3[%c0_i32_34, %c0_i32_35] : memref<8x256xf32, #tpu.memory_space<vmem>> -> memref<1x256xf32, #tpu.memory_space<vmem>>
    %59 = tpu.memref_slice %arg4[%c0_i32_32] : memref<8x!tpu.dma_semaphore, #tpu.memory_space<semaphore_mem>> -> memref<1x!tpu.dma_semaphore, #tpu.memory_space<semaphore_mem>>
    %60 = tpu.memref_squeeze %59 : memref<1x!tpu.dma_semaphore, #tpu.memory_space<semaphore_mem>> -> memref<!tpu.dma_semaphore, #tpu.memory_space<semaphore_mem>>
    tpu.wait_dma2 semaphore(%60 : memref<!tpu.dma_semaphore, #tpu.memory_space<semaphore_mem>>) src(%57 : memref<1x256xf32, #tpu.memory_space<any>>) dst(%58 : memref<1x256xf32, #tpu.memory_space<vmem>>)
    %c1_i32_36 = arith.constant 1 : i32
    %c0_i32_37 = arith.constant 0 : i32
    %61 = tpu.memref_slice %arg2[%6, %c0_i32_37] : memref<512x256xf32, #tpu.memory_space<any>> -> memref<1x256xf32, #tpu.memory_space<any>>
    %c1_i32_38 = arith.constant 1 : i32
    %c0_i32_39 = arith.constant 0 : i32
    %62 = tpu.memref_slice %arg3[%c1_i32_38, %c0_i32_39] : memref<8x256xf32, #tpu.memory_space<vmem>> -> memref<1x256xf32, #tpu.memory_space<vmem>>
    %63 = tpu.memref_slice %arg4[%c1_i32_36] : memref<8x!tpu.dma_semaphore, #tpu.memory_space<semaphore_mem>> -> memref<1x!tpu.dma_semaphore, #tpu.memory_space<semaphore_mem>>
    %64 = tpu.memref_squeeze %63 : memref<1x!tpu.dma_semaphore, #tpu.memory_space<semaphore_mem>> -> memref<!tpu.dma_semaphore, #tpu.memory_space<semaphore_mem>>
    tpu.wait_dma2 semaphore(%64 : memref<!tpu.dma_semaphore, #tpu.memory_space<semaphore_mem>>) src(%61 : memref<1x256xf32, #tpu.memory_space<any>>) dst(%62 : memref<1x256xf32, #tpu.memory_space<vmem>>)
    %c2_i32_40 = arith.constant 2 : i32
    %c0_i32_41 = arith.constant 0 : i32
    %65 = tpu.memref_slice %arg2[%9, %c0_i32_41] : memref<512x256xf32, #tpu.memory_space<any>> -> memref<1x256xf32, #tpu.memory_space<any>>
    %c2_i32_42 = arith.constant 2 : i32
    %c0_i32_43 = arith.constant 0 : i32
    %66 = tpu.memref_slice %arg3[%c2_i32_42, %c0_i32_43] : memref<8x256xf32, #tpu.memory_space<vmem>> -> memref<1x256xf32, #tpu.memory_space<vmem>>
    %67 = tpu.memref_slice %arg4[%c2_i32_40] : memref<8x!tpu.dma_semaphore, #tpu.memory_space<semaphore_mem>> -> memref<1x!tpu.dma_semaphore, #tpu.memory_space<semaphore_mem>>
    %68 = tpu.memref_squeeze %67 : memref<1x!tpu.dma_semaphore, #tpu.memory_space<semaphore_mem>> -> memref<!tpu.dma_semaphore, #tpu.memory_space<semaphore_mem>>
    tpu.wait_dma2 semaphore(%68 : memref<!tpu.dma_semaphore, #tpu.memory_space<semaphore_mem>>) src(%65 : memref<1x256xf32, #tpu.memory_space<any>>) dst(%66 : memref<1x256xf32, #tpu.memory_space<vmem>>)
    %c3_i32_44 = arith.constant 3 : i32
    %c0_i32_45 = arith.constant 0 : i32
    %69 = tpu.memref_slice %arg2[%12, %c0_i32_45] : memref<512x256xf32, #tpu.memory_space<any>> -> memref<1x256xf32, #tpu.memory_space<any>>
    %c3_i32_46 = arith.constant 3 : i32
    %c0_i32_47 = arith.constant 0 : i32
    %70 = tpu.memref_slice %arg3[%c3_i32_46, %c0_i32_47] : memref<8x256xf32, #tpu.memory_space<vmem>> -> memref<1x256xf32, #tpu.memory_space<vmem>>
    %71 = tpu.memref_slice %arg4[%c3_i32_44] : memref<8x!tpu.dma_semaphore, #tpu.memory_space<semaphore_mem>> -> memref<1x!tpu.dma_semaphore, #tpu.memory_space<semaphore_mem>>
    %72 = tpu.memref_squeeze %71 : memref<1x!tpu.dma_semaphore, #tpu.memory_space<semaphore_mem>> -> memref<!tpu.dma_semaphore, #tpu.memory_space<semaphore_mem>>
    tpu.wait_dma2 semaphore(%72 : memref<!tpu.dma_semaphore, #tpu.memory_space<semaphore_mem>>) src(%69 : memref<1x256xf32, #tpu.memory_space<any>>) dst(%70 : memref<1x256xf32, #tpu.memory_space<vmem>>)
    %c4_i32_48 = arith.constant 4 : i32
    %c0_i32_49 = arith.constant 0 : i32
    %73 = tpu.memref_slice %arg2[%15, %c0_i32_49] : memref<512x256xf32, #tpu.memory_space<any>> -> memref<1x256xf32, #tpu.memory_space<any>>
    %c4_i32_50 = arith.constant 4 : i32
    %c0_i32_51 = arith.constant 0 : i32
    %74 = tpu.memref_slice %arg3[%c4_i32_50, %c0_i32_51] : memref<8x256xf32, #tpu.memory_space<vmem>> -> memref<1x256xf32, #tpu.memory_space<vmem>>
    %75 = tpu.memref_slice %arg4[%c4_i32_48] : memref<8x!tpu.dma_semaphore, #tpu.memory_space<semaphore_mem>> -> memref<1x!tpu.dma_semaphore, #tpu.memory_space<semaphore_mem>>
    %76 = tpu.memref_squeeze %75 : memref<1x!tpu.dma_semaphore, #tpu.memory_space<semaphore_mem>> -> memref<!tpu.dma_semaphore, #tpu.memory_space<semaphore_mem>>
    tpu.wait_dma2 semaphore(%76 : memref<!tpu.dma_semaphore, #tpu.memory_space<semaphore_mem>>) src(%73 : memref<1x256xf32, #tpu.memory_space<any>>) dst(%74 : memref<1x256xf32, #tpu.memory_space<vmem>>)
    %c5_i32_52 = arith.constant 5 : i32
    %c0_i32_53 = arith.constant 0 : i32
    %77 = tpu.memref_slice %arg2[%18, %c0_i32_53] : memref<512x256xf32, #tpu.memory_space<any>> -> memref<1x256xf32, #tpu.memory_space<any>>
    %c5_i32_54 = arith.constant 5 : i32
    %c0_i32_55 = arith.constant 0 : i32
    %78 = tpu.memref_slice %arg3[%c5_i32_54, %c0_i32_55] : memref<8x256xf32, #tpu.memory_space<vmem>> -> memref<1x256xf32, #tpu.memory_space<vmem>>
    %79 = tpu.memref_slice %arg4[%c5_i32_52] : memref<8x!tpu.dma_semaphore, #tpu.memory_space<semaphore_mem>> -> memref<1x!tpu.dma_semaphore, #tpu.memory_space<semaphore_mem>>
    %80 = tpu.memref_squeeze %79 : memref<1x!tpu.dma_semaphore, #tpu.memory_space<semaphore_mem>> -> memref<!tpu.dma_semaphore, #tpu.memory_space<semaphore_mem>>
    tpu.wait_dma2 semaphore(%80 : memref<!tpu.dma_semaphore, #tpu.memory_space<semaphore_mem>>) src(%77 : memref<1x256xf32, #tpu.memory_space<any>>) dst(%78 : memref<1x256xf32, #tpu.memory_space<vmem>>)
    %c6_i32_56 = arith.constant 6 : i32
    %c0_i32_57 = arith.constant 0 : i32
    %81 = tpu.memref_slice %arg2[%21, %c0_i32_57] : memref<512x256xf32, #tpu.memory_space<any>> -> memref<1x256xf32, #tpu.memory_space<any>>
    %c6_i32_58 = arith.constant 6 : i32
    %c0_i32_59 = arith.constant 0 : i32
    %82 = tpu.memref_slice %arg3[%c6_i32_58, %c0_i32_59] : memref<8x256xf32, #tpu.memory_space<vmem>> -> memref<1x256xf32, #tpu.memory_space<vmem>>
    %83 = tpu.memref_slice %arg4[%c6_i32_56] : memref<8x!tpu.dma_semaphore, #tpu.memory_space<semaphore_mem>> -> memref<1x!tpu.dma_semaphore, #tpu.memory_space<semaphore_mem>>
    %84 = tpu.memref_squeeze %83 : memref<1x!tpu.dma_semaphore, #tpu.memory_space<semaphore_mem>> -> memref<!tpu.dma_semaphore, #tpu.memory_space<semaphore_mem>>
    tpu.wait_dma2 semaphore(%84 : memref<!tpu.dma_semaphore, #tpu.memory_space<semaphore_mem>>) src(%81 : memref<1x256xf32, #tpu.memory_space<any>>) dst(%82 : memref<1x256xf32, #tpu.memory_space<vmem>>)
    %c7_i32_60 = arith.constant 7 : i32
    %c0_i32_61 = arith.constant 0 : i32
    %85 = tpu.memref_slice %arg2[%24, %c0_i32_61] : memref<512x256xf32, #tpu.memory_space<any>> -> memref<1x256xf32, #tpu.memory_space<any>>
    %c7_i32_62 = arith.constant 7 : i32
    %c0_i32_63 = arith.constant 0 : i32
    %86 = tpu.memref_slice %arg3[%c7_i32_62, %c0_i32_63] : memref<8x256xf32, #tpu.memory_space<vmem>> -> memref<1x256xf32, #tpu.memory_space<vmem>>
    %87 = tpu.memref_slice %arg4[%c7_i32_60] : memref<8x!tpu.dma_semaphore, #tpu.memory_space<semaphore_mem>> -> memref<1x!tpu.dma_semaphore, #tpu.memory_space<semaphore_mem>>
    %88 = tpu.memref_squeeze %87 : memref<1x!tpu.dma_semaphore, #tpu.memory_space<semaphore_mem>> -> memref<!tpu.dma_semaphore, #tpu.memory_space<semaphore_mem>>
    tpu.wait_dma2 semaphore(%88 : memref<!tpu.dma_semaphore, #tpu.memory_space<semaphore_mem>>) src(%85 : memref<1x256xf32, #tpu.memory_space<any>>) dst(%86 : memref<1x256xf32, #tpu.memory_space<vmem>>)
    return
  }
  func.func @transform_1(%arg0: i32, %arg1: memref<8xi32, #tpu.memory_space<smem>>) -> (i32, i32) {
    %c0_i32 = arith.constant 0 : i32
    %c0_i32_0 = arith.constant 0 : i32
    return %arg0, %c0_i32 : i32, i32
  }
}

</mosaic_0001>

<llo_original>
// kernel: tpu_custom_call.1
$region0: #{tpu_custom_call.1}
  #allocation0 [shape = 'u32[]', space=smem, size = 0x4, offset = 0x4, fixed_abs, tag = 'smem constant byte address 0x4 - core index']
  #allocation1 [shape = 'u32[144,128]{1,0:T(1,128)}', space=vmem, size = 0x12000, scoped, tag = 'internal scratch']
  #allocation2 [shape = 's32[8]{0}', space=sflag, size = 0x20, scoped, tag = 'scratch operand']
  #allocation3 [shape = 's32[1]{0}', space=sflag, size = 0x4, scoped, tag = 'scoped memory for tpu_custom_call.1']
  #allocation4 [shape = 'u8[512]{0}', space=smem, size = 0x200, scoped, tag = 'prefetched SMEM operand 0']
  #allocation7 [shape = 's32[]', space=sflag, size = 0x4, offset = 0, fixed_abs, tag = 'sflag constant byte address 0x0 - dummy sync flag']
  #allocation8 [shape = 's32[]', space=sflag, size = 0x4, offset = 0, fixed_abs, tag = 'sflag constant byte address 0x0 - dummy sync flag']
  #allocation9 [shape = 's32[]', space=sflag, size = 0x4, offset = 0, fixed_abs, tag = 'sflag constant byte address 0x0 - dummy sync flag']
  #allocation10 [shape = 's32[]', space=sflag, size = 0x4, offset = 0, fixed_abs, tag = 'sflag constant byte address 0x0 - dummy sync flag']
  #allocation11 [shape = 's32[]', space=sflag, size = 0x4, offset = 0, fixed_abs, tag = 'sflag constant byte address 0x0 - dummy sync flag']
  #allocation12 [shape = 's32[]', space=sflag, size = 0x4, offset = 0, fixed_abs, tag = 'sflag constant byte address 0x0 - dummy sync flag']
  #allocation13 [shape = 's32[]', space=sflag, size = 0x4, offset = 0, fixed_abs, tag = 'sflag constant byte address 0x0 - dummy sync flag']
  #allocation14 [shape = 's32[]', space=sflag, size = 0x4, offset = 0, fixed_abs, tag = 'sflag constant byte address 0x0 - dummy sync flag']
  %s0 = inlined_call_operand.hbm [shape: s32[8], index: 0, kind: input, shape index: {}]
  %s1 = inlined_call_operand.hbm [shape: f32[512,256], index: 1, kind: input, shape index: {}]
  %s2 = inlined_call_operand.hbm [shape: f32[8,256], index: 2, kind: output, shape index: {}]
  %s3 = sld [smem:[#allocation0]]
  $region10: #{tpu_custom_call.1} parent=0
    _
  %s5 = ssub.s32 1, %s3
  %s6 = scalar_select 0, %s5, %s3
  %8 = dma.hbm_to_smem %s0, 16, [#allocation4], [#allocation3]
  %9 = dma.done [#allocation3], 16
  %10 = sfence
  $region1: #{tpu_custom_call.1} parent=0
    #allocation5 [shape = 'u8[8192]{0}', space=vmem, size = 0x2000, scoped, tag = 'output window, operand 0, single buffered']
    #allocation6 [shape = 's32[1]{0}', space=sflag, size = 0x4, scoped, tag = 'scoped memory for tpu_custom_call.1']
    %11 = vsyncpa [#allocation6], 0
    %s12 = smul.u32 0, 8
    %s13 = sld [smem:[#allocation4 + %s12]]
    %s14 = sadd.s32 %s12, 1
    %s15 = sld [smem:[#allocation4 + %s14]]
    %s16 = sadd.s32 %s12, 2
    %s17 = sld [smem:[#allocation4 + %s16]]
    %s18 = sadd.s32 %s12, 3
    %s19 = sld [smem:[#allocation4 + %s18]]
    %s20 = sadd.s32 %s12, 4
    %s21 = sld [smem:[#allocation4 + %s20]]
    %s22 = sadd.s32 %s12, 5
    %s23 = sld [smem:[#allocation4 + %s22]]
    %s24 = sadd.s32 %s12, 6
    %s25 = sld [smem:[#allocation4 + %s24]]
    %s26 = sadd.s32 %s12, 7
    %s27 = sld [smem:[#allocation4 + %s26]]
    %s28 = sshrl.u32 %s13, 3
    %s29 = sand.u32 %s13, 7
    %s30 = smul.u32 %s28, 16
    %s31 = sadd.s32 %s29, %s30
    %s32 = smul.addr %s31, 16
    %s33 = scalar_lea.hbm %s1, %s32
    %s35 = sshll.u32 [#allocation5], 4
    %s36 = int_to_ptr.vmem [resolvable:$true] %s35
    %38 = dma.hbm_to_vmem [thread:$0]  %s33, 32, %s36, [#allocation2], 128, 128, 1
    %s39 = sshrl.u32 %s15, 3
    %s40 = sand.u32 %s15, 7
    %s41 = smul.u32 %s39, 16
    %s42 = sadd.s32 %s40, %s41
    %s43 = smul.addr %s42, 16
    %s44 = scalar_lea.hbm %s1, %s43
    %s45 = scalar_lea.vmem [#allocation5], 1
    %s46 = scalar_lea.sflag [#allocation2], 1
    %s48 = sshll.u32 %s45, 4
    %s49 = int_to_ptr.vmem [resolvable:$true] %s48
    %51 = dma.hbm_to_vmem [thread:$0]  %s44, 32, %s49, %s46, 128, 128, 1
    %s52 = sshrl.u32 %s17, 3
    %s53 = sand.u32 %s17, 7
    %s54 = smul.u32 %s52, 16
    %s55 = sadd.s32 %s53, %s54
    %s56 = smul.addr %s55, 16
    %s57 = scalar_lea.hbm %s1, %s56
    %s58 = scalar_lea.vmem [#allocation5], 2
    %s59 = scalar_lea.sflag [#allocation2], 2
    %s61 = sshll.u32 %s58, 4
    %s62 = int_to_ptr.vmem [resolvable:$true] %s61
    %64 = dma.hbm_to_vmem [thread:$0]  %s57, 32, %s62, %s59, 128, 128, 1
    %s65 = sshrl.u32 %s19, 3
    %s66 = sand.u32 %s19, 7
    %s67 = smul.u32 %s65, 16
    %s68 = sadd.s32 %s66, %s67
    %s69 = smul.addr %s68, 16
    %s70 = scalar_lea.hbm %s1, %s69
    %s71 = scalar_lea.vmem [#allocation5], 3
    %s72 = scalar_lea.sflag [#allocation2], 3
    %s74 = sshll.u32 %s71, 4
    %s75 = int_to_ptr.vmem [resolvable:$true] %s74
    %77 = dma.hbm_to_vmem [thread:$0]  %s70, 32, %s75, %s72, 128, 128, 1
    %s78 = sshrl.u32 %s21, 3
    %s79 = sand.u32 %s21, 7
    %s80 = smul.u32 %s78, 16
    %s81 = sadd.s32 %s79, %s80
    %s82 = smul.addr %s81, 16
    %s83 = scalar_lea.hbm %s1, %s82
    %s84 = scalar_lea.vmem [#allocation5], 4
    %s85 = scalar_lea.sflag [#allocation2], 4
    %s87 = sshll.u32 %s84, 4
    %s88 = int_to_ptr.vmem [resolvable:$true] %s87
    %90 = dma.hbm_to_vmem [thread:$0]  %s83, 32, %s88, %s85, 128, 128, 1
    %s91 = sshrl.u32 %s23, 3
    %s92 = sand.u32 %s23, 7
    %s93 = smul.u32 %s91, 16
    %s94 = sadd.s32 %s92, %s93
    %s95 = smul.addr %s94, 16
    %s96 = scalar_lea.hbm %s1, %s95
    %s97 = scalar_lea.vmem [#allocation5], 5
    %s98 = scalar_lea.sflag [#allocation2], 5
    %s100 = sshll.u32 %s97, 4
    %s101 = int_to_ptr.vmem [resolvable:$true] %s100
    %103 = dma.hbm_to_vmem [thread:$0]  %s96, 32, %s101, %s98, 128, 128, 1
    %s104 = sshrl.u32 %s25, 3
    %s105 = sand.u32 %s25, 7
    %s106 = smul.u32 %s104, 16
    %s107 = sadd.s32 %s105, %s106
    %s108 = smul.addr %s107, 16
    %s109 = scalar_lea.hbm %s1, %s108
    %s110 = scalar_lea.vmem [#allocation5], 6
    %s111 = scalar_lea.sflag [#allocation2], 6
    %s113 = sshll.u32 %s110, 4
    %s114 = int_to_ptr.vmem [resolvable:$true] %s113
    %116 = dma.hbm_to_vmem [thread:$0]  %s109, 32, %s114, %s111, 128, 128, 1
    %s117 = sshrl.u32 %s27, 3
    %s118 = sand.u32 %s27, 7
    %s119 = smul.u32 %s117, 16
    %s120 = sadd.s32 %s118, %s119
    %s121 = smul.addr %s120, 16
    %s122 = scalar_lea.hbm %s1, %s121
    %s123 = scalar_lea.vmem [#allocation5], 7
    %s124 = scalar_lea.sflag [#allocation2], 7
    %s126 = sshll.u32 %s123, 4
    %s127 = int_to_ptr.vmem [resolvable:$true] %s126
    %129 = dma.hbm_to_vmem [thread:$0]  %s122, 32, %s127, %s124, 128, 128, 1
    %s130 = smul.u32 1, 2
    %s131 = sshll.u32 %s130, 4
    %132 = dma.done [#allocation2], %s131
    %s133 = sshll.u32 %s130, 4
    %134 = dma.done %s46, %s133
    %s135 = sshll.u32 %s130, 4
    %136 = dma.done %s59, %s135
    %s137 = sshll.u32 %s130, 4
    %138 = dma.done %s72, %s137
    %s139 = sshll.u32 %s130, 4
    %140 = dma.done %s85, %s139
    %s141 = sshll.u32 %s130, 4
    %142 = dma.done %s98, %s141
    %s143 = sshll.u32 %s130, 4
    %144 = dma.done %s111, %s143
    %s145 = sshll.u32 %s130, 4
    %146 = dma.done %s124, %s145
    // Predicated region
    $region2: #{tpu_custom_call.1} parent=1 // pred_check
      _
    $region3: #{tpu_custom_call.1} parent=1 // pred_check_branch
      %148 = sbr.rel (0) target = $region5
    $region4: #{tpu_custom_call.1} parent=1 // pred_region
      %s150 = ssub.s32 256, 256
      %151 = vsyncadd [#allocation6], %s150
      %s153 = sshll.u32 [#allocation5], 4
      %s154 = int_to_ptr.vmem [resolvable:$true] %s153
      %156 = dma.vmem_to_hbm [thread:$0]  %s154, 256, %s2, [#allocation6]
    $region5: #{tpu_custom_call.1} parent=1 // pred_fallthru
      _
    // Predicated region
    $region6: #{tpu_custom_call.1} parent=1 // pred_check
      _
    $region7: #{tpu_custom_call.1} parent=1 // pred_check_branch
      %158 = sbr.rel (0) target = $region9
    $region8: #{tpu_custom_call.1} parent=1 // pred_region
      %159 = dma.done [#allocation6], 256
    $region9: #{tpu_custom_call.1} parent=1 // pred_fallthru
      _
    %160 = vsyncpa [#allocation6], 1
  %161 = vsyncmov [#allocation2]
  %s162 = vpop.sfrf %161
  %p163 = scmp.eq.s32.totalorder %s162, 0
  %p164 = pneg %p163
  %166 = shalt.err (%p164)
  %s167 = scalar_lea.sflag [#allocation2], 1
  %168 = vsyncmov %s167
  %s169 = vpop.sfrf %168
  %p170 = scmp.eq.s32.totalorder %s169, 0
  %p171 = pneg %p170
  %173 = shalt.err (%p171)
  %s174 = scalar_lea.sflag [#allocation2], 2
  %175 = vsyncmov %s174
  %s176 = vpop.sfrf %175
  %p177 = scmp.eq.s32.totalorder %s176, 0
  %p178 = pneg %p177
  %180 = shalt.err (%p178)
  %s181 = scalar_lea.sflag [#allocation2], 3
  %182 = vsyncmov %s181
  %s183 = vpop.sfrf %182
  %p184 = scmp.eq.s32.totalorder %s183, 0
  %p185 = pneg %p184
  %187 = shalt.err (%p185)
  %s188 = scalar_lea.sflag [#allocation2], 4
  %189 = vsyncmov %s188
  %s190 = vpop.sfrf %189
  %p191 = scmp.eq.s32.totalorder %s190, 0
  %p192 = pneg %p191
  %194 = shalt.err (%p192)
  %s195 = scalar_lea.sflag [#allocation2], 5
  %196 = vsyncmov %s195
  %s197 = vpop.sfrf %196
  %p198 = scmp.eq.s32.totalorder %s197, 0
  %p199 = pneg %p198
  %201 = shalt.err (%p199)
  %s202 = scalar_lea.sflag [#allocation2], 6
  %203 = vsyncmov %s202
  %s204 = vpop.sfrf %203
  %p205 = scmp.eq.s32.totalorder %s204, 0
  %p206 = pneg %p205
  %208 = shalt.err (%p206)
  %s209 = scalar_lea.sflag [#allocation2], 7
  %210 = vsyncmov %s209
  %s211 = vpop.sfrf %210
  %p212 = scmp.eq.s32.totalorder %s211, 0
  %p213 = pneg %p212
  %215 = shalt.err (%p213)

</llo_original>
